<compile_context>
chip_gen: v5e
topology: v5e:2x2
jax: 0.10.0
libtpu: 0.0.40
codegen_flags: <defaults>
</compile_context>

<pallas_src>
import functools

import jax
import jax.numpy as jnp
from jax.experimental import pallas as pl
from jax.experimental.pallas import tpu as pltpu


# ----------------------------------------------------------------------------
# Compiler params (per-generation VMEM budget)
# ----------------------------------------------------------------------------

def _vmem_limit_bytes():
    cap = None
    try:
        cap = int(pltpu.get_tpu_info().vmem_capacity_bytes)
    except Exception:
        cap = None
    if cap is not None and cap >= 128 * 1024 * 1024:
        return 100 * 1024 * 1024        # v5e / v6e: use the 128 MiB headroom
    return 48 * 1024 * 1024             # v7x (64 MiB physical) or unknown


def _cparams(semantics):
    return pltpu.CompilerParams(
        dimension_semantics=semantics,
        vmem_limit_bytes=_vmem_limit_bytes(),
    )


def _ln_f32(x, gamma, beta, eps):
    """Row-wise LayerNorm in f32 (x: (rows, D); gamma/beta: (1, D))."""
    x = x.astype(jnp.float32)
    mu = jnp.mean(x, axis=-1, keepdims=True)
    xc = x - mu
    var = jnp.mean(xc * xc, axis=-1, keepdims=True)
    return xc * jax.lax.rsqrt(var + eps) * gamma + beta


# ----------------------------------------------------------------------------
# Kernel 1: patch-embed matmul + CLS + positional embedding + pre-LayerNorm
#           (single aligned (S, D) store; bf16 output)
# ----------------------------------------------------------------------------

def _embed_kernel(patches_ref, w_ref, b_ref, clspos_ref, g_ref, bta_ref,
                  o_ref, *, eps):
    p = patches_ref[0].astype(jnp.bfloat16)                         # (nP, Cpp)
    emb = jnp.dot(p, w_ref[...], preferred_element_type=jnp.float32)
    emb = emb + b_ref[...].astype(jnp.float32)                      # (nP, D)

    # clspos row 0 already holds cls + pos[0]; rows 1: hold pos[1:].
    zero = jnp.zeros((1, emb.shape[1]), jnp.float32)
    toks = jnp.concatenate([zero, emb], axis=0) \
        + clspos_ref[...].astype(jnp.float32)                       # (S, D)

    o_ref[0] = _ln_f32(toks, g_ref[...].astype(jnp.float32),
                       bta_ref[...].astype(jnp.float32), eps).astype(o_ref.dtype)


def embed_tokens(patches, w_patch_bf16, conv_b, clspos, ln_g, ln_b, eps=1e-5):
    """(B, nP, Cpp) -> (B, S=nP+1, D) bf16 tokens after CLS+pos+pre-LN."""
    B, nP, Cpp = patches.shape
    D = w_patch_bf16.shape[1]
    S = nP + 1
    return pl.pallas_call(
        functools.partial(_embed_kernel, eps=eps),
        out_shape=jax.ShapeDtypeStruct((B, S, D), jnp.bfloat16),
        grid=(B,),
        in_specs=[
            pl.BlockSpec((1, nP, Cpp), lambda i: (i, 0, 0)),
            pl.BlockSpec((Cpp, D), lambda i: (0, 0)),
            pl.BlockSpec((1, D), lambda i: (0, 0)),
            pl.BlockSpec((S, D), lambda i: (0, 0)),
            pl.BlockSpec((1, D), lambda i: (0, 0)),
            pl.BlockSpec((1, D), lambda i: (0, 0)),
        ],
        out_specs=pl.BlockSpec((1, S, D), lambda i: (i, 0, 0)),
        compiler_params=_cparams(("parallel",)),
    )(patches, w_patch_bf16, conv_b.reshape(1, D), clspos,
      ln_g.reshape(1, D), ln_b.reshape(1, D))


# ----------------------------------------------------------------------------
# Kernel 2: full encoder stack.  grid = (B, L); per-layer weights streamed,
# hidden state carried across layers in a VMEM scratch (f32 residual stream).
# ----------------------------------------------------------------------------

def _encoder_layer_kernel(x_ref, ln1g_ref, ln1b_ref, wqkv_ref, bqkv_ref,
                          wo_ref, bo_ref, ln2g_ref, ln2b_ref,
                          w1_ref, b1_ref, w2_ref, b2_ref,
                          o_ref, h_scr, *, num_heads, head_dim, eps, scale,
                          drop_cls):
    l = pl.program_id(1)

    @pl.when(l == 0)
    def _():
        h_scr[...] = x_ref[0].astype(jnp.float32)

    xb = h_scr[...]                                                  # (S, D) f32

    # ---- attention: LN1 + fused QKV + MHA + single K=D output projection ----
    hn = _ln_f32(xb, ln1g_ref[0].astype(jnp.float32),
                 ln1b_ref[0].astype(jnp.float32), eps)
    qkv = jnp.dot(hn.astype(jnp.bfloat16), wqkv_ref[0],
                  preferred_element_type=jnp.float32) \
        + bqkv_ref[0].astype(jnp.float32)                            # (S, 3D)

    D = num_heads * head_dim
    # Static per-head loop (H small); at CLIP-L scale a head grid axis or
    # lax.fori_loop would bound the score live-ranges further.
    heads = []
    for hd in range(num_heads):
        lo = hd * head_dim
        q = qkv[:, lo:lo + head_dim].astype(jnp.bfloat16)
        k = qkv[:, D + lo:D + lo + head_dim].astype(jnp.bfloat16)
        v = qkv[:, 2 * D + lo:2 * D + lo + head_dim].astype(jnp.bfloat16)

        s = jax.lax.dot_general(q, k, (((1,), (1,)), ((), ())),
                                preferred_element_type=jnp.float32) * scale
        s = s - jnp.max(s, axis=-1, keepdims=True)
        p = jnp.exp(s)
        p = p * pl.reciprocal(jnp.sum(p, axis=-1, keepdims=True), approx=True)
        heads.append(jnp.dot(p.astype(jnp.bfloat16), v,
                             preferred_element_type=jnp.float32))    # (S, Dh)

    ctx = jnp.concatenate(heads, axis=-1)                            # (S, D)
    attn = xb + bo_ref[0].astype(jnp.float32) + jnp.dot(
        ctx.astype(jnp.bfloat16), wo_ref[0],
        preferred_element_type=jnp.float32)                          # (S, D)

    # ---- MLP: LN2 + fc1 + quick-GELU + fc2 + residual ----
    hn2 = _ln_f32(attn, ln2g_ref[0].astype(jnp.float32),
                  ln2b_ref[0].astype(jnp.float32), eps)
    h1 = jnp.dot(hn2.astype(jnp.bfloat16), w1_ref[0],
                 preferred_element_type=jnp.float32) \
        + b1_ref[0].astype(jnp.float32)
    h1 = h1 * jax.nn.sigmoid(1.702 * h1)                             # quick_gelu
    out = attn + jnp.dot(h1.astype(jnp.bfloat16), w2_ref[0],
                         preferred_element_type=jnp.float32) \
        + b2_ref[0].astype(jnp.float32)

    h_scr[...] = out

    @pl.when(l == pl.num_programs(1) - 1)
    def _():
        if drop_cls:
            o_ref[0] = out[1:, :].astype(o_ref.dtype)
        else:
            o_ref[0] = out.astype(o_ref.dtype)


def encoder_layers(tokens, stk, num_heads, eps=1e-5, drop_cls=True):
    """Run the first L stacked encoder layers; returns bf16 (B, S[-1], D)."""
    B, S, D = tokens.shape
    L = stk["wqkv"].shape[0]
    M = stk["w1"].shape[2]
    Dh = D // num_heads
    S_out = S - 1 if drop_cls else S

    flops = L * B * (2 * S * D * 3 * D            # QKV projection
                     + 4 * num_heads * S * S * Dh  # scores + p@v
                     + 2 * S * D * D               # output projection
                     + 4 * S * D * M)              # MLP
    cost = pl.CostEstimate(
        flops=int(flops),
        transcendentals=int(L * B * (num_heads * S * S + S * M)),
        bytes_accessed=int(2 * (2 * B * S * D
                                + L * (4 * D * D + 2 * D * M + 8 * D + M))))

    def vec_spec():
        return pl.BlockSpec((1, 1, D), lambda b, l: (l, 0, 0))

    in_specs = [
        pl.BlockSpec((1, S, D), lambda b, l: (b, 0, 0)),             # tokens
        vec_spec(),                                                  # ln1_g
        vec_spec(),                                                  # ln1_b
        pl.BlockSpec((1, D, 3 * D), lambda b, l: (l, 0, 0)),         # wqkv
        pl.BlockSpec((1, 1, 3 * D), lambda b, l: (l, 0, 0)),         # bqkv
        pl.BlockSpec((1, D, D), lambda b, l: (l, 0, 0)),             # wo
        vec_spec(),                                                  # bo
        vec_spec(),                                                  # ln2_g
        vec_spec(),                                                  # ln2_b
        pl.BlockSpec((1, D, M), lambda b, l: (l, 0, 0)),             # w1
        pl.BlockSpec((1, 1, M), lambda b, l: (l, 0, 0)),             # b1
        pl.BlockSpec((1, M, D), lambda b, l: (l, 0, 0)),             # w2
        vec_spec(),                                                  # b2
    ]

    return pl.pallas_call(
        functools.partial(_encoder_layer_kernel, num_heads=num_heads,
                          head_dim=Dh, eps=eps, scale=Dh ** -0.5,
                          drop_cls=drop_cls),
        out_shape=jax.ShapeDtypeStruct((B, S_out, D), jnp.bfloat16),
        grid=(B, L),
        in_specs=in_specs,
        out_specs=pl.BlockSpec((1, S_out, D), lambda b, l: (b, 0, 0)),
        scratch_shapes=[pltpu.VMEM((S, D), jnp.float32)],
        compiler_params=_cparams(("parallel", "arbitrary")),
        cost_estimate=cost,
    )(tokens, stk["ln1_g"], stk["ln1_b"], stk["wqkv"], stk["bqkv"],
      stk["wo"], stk["bo"], stk["ln2_g"], stk["ln2_b"],
      stk["w1"], stk["b1"], stk["w2"], stk["b2"])


# ----------------------------------------------------------------------------
# Synthetic CLIP-style vision tower built on the fused kernels
# ----------------------------------------------------------------------------

class Cfg:
    image_size = 16
    patch_size = 8
    in_channels = 3
    hidden_size = 32
    num_heads = 4
    mlp_size = 64
    num_layers = 3


def init_params(cfg, key):
    D, C, P = cfg.hidden_size, cfg.in_channels, cfg.patch_size
    nP = (cfg.image_size // P) ** 2
    S = nP + 1
    ks = iter(jax.random.split(key, 64))
    n = lambda shape: 0.02 * jax.random.normal(next(ks), shape, jnp.float32)
    params = {
        "conv_w": n((D, C, P, P)),            # PyTorch conv weight (OIHW)
        "conv_b": n((D,)),
        "cls": n((D,)),
        "pos": n((S, D)),
        "pre_ln_g": jnp.ones((D,), jnp.float32),
        "pre_ln_b": jnp.zeros((D,), jnp.float32),
        "layers": [],
    }
    for _ in range(cfg.num_layers):
        params["layers"].append({
            "ln1_g": jnp.ones((D,), jnp.float32), "ln1_b": jnp.zeros((D,), jnp.float32),
            "qkv_w": n((D, 3 * D)), "qkv_b": n((3 * D,)),   # fused QKV weights
            "o_w": n((D, D)), "o_b": n((D,)),
            "ln2_g": jnp.ones((D,), jnp.float32), "ln2_b": jnp.zeros((D,), jnp.float32),
            "fc1_w": n((D, cfg.mlp_size)), "fc1_b": n((cfg.mlp_size,)),
            "fc2_w": n((cfg.mlp_size, D)), "fc2_b": n((D,)),
        })
    return params


def patchify_nchw(x, patch):
    """(B, C, H, W) NCHW -> (B, nH*nW, C*P*P), matching conv2d(k=s=P) + flatten."""
    B, C, H, W = x.shape
    nH, nW = H // patch, W // patch
    x = x.reshape(B, C, nH, patch, nW, patch)
    x = x.transpose(0, 2, 4, 1, 3, 5)                 # (B, nH, nW, C, P, P)
    return x.reshape(B, nH * nW, C * patch * patch)


def _stack_layer_weights(layers, D, M):
    """Stack per-layer params into (L, ...) tensors; weights in bf16."""
    bf = jnp.bfloat16
    L = len(layers)
    g = lambda k: jnp.stack([lp[k] for lp in layers])
    return {
        "ln1_g": g("ln1_g").reshape(L, 1, D),
        "ln1_b": g("ln1_b").reshape(L, 1, D),
        "wqkv": g("qkv_w").astype(bf),                      # (L, D, 3D)
        "bqkv": g("qkv_b").reshape(L, 1, 3 * D),
        "wo": g("o_w").astype(bf),                          # (L, D, D)
        "bo": g("o_b").reshape(L, 1, D),
        "ln2_g": g("ln2_g").reshape(L, 1, D),
        "ln2_b": g("ln2_b").reshape(L, 1, D),
        "w1": g("fc1_w").astype(bf),                        # (L, D, M)
        "b1": g("fc1_b").reshape(L, 1, M),
        "w2": g("fc2_w").astype(bf),                        # (L, M, D)
        "b2": g("fc2_b").reshape(L, 1, D),
    }


def vision_tower_forward(x, params, cfg,
                         vision_feature_layer=-2,
                         vision_feature_select_strategy="patch"):
    """Equivalent of VisionTower.forward: run the tower with hidden states,
    pick hidden_states[vision_feature_layer], drop CLS token under 'patch'."""
    D, P, M = cfg.hidden_size, cfg.patch_size, cfg.mlp_size

    if vision_feature_select_strategy == "patch":
        drop_cls = True
    elif vision_feature_select_strategy == "cls_patch":
        drop_cls = False
    else:
        raise ValueError(
            f"Unexpected select feature: {vision_feature_select_strategy}")

    # patch-embed conv (k = s = P) as a fused Pallas matmul over patch rows,
    # with CLS concat + positional embedding + pre-LayerNorm in the epilogue.
    patches = patchify_nchw(x, P)                          # (B, nP, C*P*P)
    w_patch = params["conv_w"].reshape(D, -1).T.astype(jnp.bfloat16)
    clspos = params["pos"].at[0].add(params["cls"])        # row 0 = cls + pos[0]
    tokens = embed_tokens(patches, w_patch, params["conv_b"], clspos,
                          params["pre_ln_g"], params["pre_ln_b"])

    num_layers = len(params["layers"])
    n_states = num_layers + 1                              # [embed, layer1, ..., layerL]
    idx = (vision_feature_layer if vision_feature_layer >= 0
           else n_states + vision_feature_layer)

    if idx == 0:
        return tokens[:, 1:] if drop_cls else tokens

    # Layers beyond the selected hidden state are never consumed by forward(),
    # so they are skipped; the returned features are identical.
    stk = _stack_layer_weights(params["layers"][:idx], D, M)
    return encoder_layers(tokens, stk, cfg.num_heads, drop_cls=drop_cls)


if __name__ == "__main__":
    cfg = Cfg()
    key = jax.random.PRNGKey(0)
    k_x, k_p = jax.random.split(key)
    x = jax.random.normal(
        k_x, (2, cfg.in_channels, cfg.image_size, cfg.image_size), jnp.float32)
    params = init_params(cfg, k_p)

    feats = vision_tower_forward(x, params, cfg)
    feats = jax.block_until_ready(feats)
    expected_tokens = (cfg.image_size // cfg.patch_size) ** 2  # CLS dropped
    assert feats.shape == (2, expected_tokens, cfg.hidden_size), feats.shape
    assert bool(jnp.all(jnp.isfinite(feats.astype(jnp.float32))))
    print("KERNEL_OK")
</pallas_src>

<mosaic_0001>
module attributes {stable_mosaic.version = 11 : i64} {
  func.func @_embed_kernel(%arg0: i32, %arg1: memref<1x4x192xf32, #tpu.memory_space<vmem>>, %arg2: memref<192x32xbf16, #tpu.memory_space<vmem>>, %arg3: memref<1x32xf32, #tpu.memory_space<vmem>>, %arg4: memref<5x32xf32, #tpu.memory_space<vmem>>, %arg5: memref<1x32xf32, #tpu.memory_space<vmem>>, %arg6: memref<1x32xf32, #tpu.memory_space<vmem>>, %arg7: memref<1x5x32xbf16, #tpu.memory_space<vmem>>) attributes {dimension_semantics = [#tpu.dimension_semantics<parallel>], iteration_bounds = array<i64: 2>, scalar_prefetch = 0 : i64, scratch_operands = 0 : i64, tpu.core_type = #tpu.core_type<tc>, window_params = [{transform_indices = @transform_0, window_bounds = array<i64: 1, 4, 192>}, {pipeline_mode = #tpu.pipeline_mode<synchronous>, transform_indices = @transform_1, window_bounds = array<i64: 192, 32>}, {pipeline_mode = #tpu.pipeline_mode<synchronous>, transform_indices = @transform_2, window_bounds = array<i64: 1, 32>}, {pipeline_mode = #tpu.pipeline_mode<synchronous>, transform_indices = @transform_3, window_bounds = array<i64: 5, 32>}, {pipeline_mode = #tpu.pipeline_mode<synchronous>, transform_indices = @transform_4, window_bounds = array<i64: 1, 32>}, {pipeline_mode = #tpu.pipeline_mode<synchronous>, transform_indices = @transform_5, window_bounds = array<i64: 1, 32>}, {transform_indices = @transform_6, window_bounds = array<i64: 1, 5, 32>}]} {
    %c0 = arith.constant 0 : index
    %c0_0 = arith.constant 0 : index
    %c0_1 = arith.constant 0 : index
    %0 = vector.load %arg1[%c0, %c0_0, %c0_1] : memref<1x4x192xf32, #tpu.memory_space<vmem>>, vector<1x4x192xf32>
    %1 = vector.shape_cast %0 : vector<1x4x192xf32> to vector<4x192xf32>
    %2 = arith.truncf %1 : vector<4x192xf32> to vector<4x192xbf16>
    %c0_2 = arith.constant 0 : index
    %c0_3 = arith.constant 0 : index
    %3 = vector.load %arg2[%c0_2, %c0_3] : memref<192x32xbf16, #tpu.memory_space<vmem>>, vector<192x32xbf16>
    %cst = arith.constant dense<0.000000e+00> : vector<4x32xf32>
    %4 = tpu.matmul %2, %3, %cst {dimension_numbers = #tpu.dot_dimension_numbers<[1], [0], [0], [1], [0, 0, 1, 1], [], []>} : vector<4x192xbf16>, vector<192x32xbf16>, vector<4x32xf32> -> vector<4x32xf32>
    %c0_4 = arith.constant 0 : index
    %c0_5 = arith.constant 0 : index
    %5 = vector.load %arg3[%c0_4, %c0_5] : memref<1x32xf32, #tpu.memory_space<vmem>>, vector<1x32xf32>
    %6 = vector.broadcast %5 : vector<1x32xf32> to vector<4x32xf32>
    %7 = arith.addf %4, %6 : vector<4x32xf32>
    %cst_6 = arith.constant 0.000000e+00 : f32
    %8 = vector.broadcast %cst_6 : f32 to vector<1x32xf32>
    %9 = tpu.concatenate %8, %7 in 0 : vector<1x32xf32>, vector<4x32xf32> -> vector<5x32xf32>
    %c0_7 = arith.constant 0 : index
    %c0_8 = arith.constant 0 : index
    %10 = vector.load %arg4[%c0_7, %c0_8] : memref<5x32xf32, #tpu.memory_space<vmem>>, vector<5x32xf32>
    %11 = arith.addf %9, %10 : vector<5x32xf32>
    %c0_9 = arith.constant 0 : index
    %c0_10 = arith.constant 0 : index
    %12 = vector.load %arg5[%c0_9, %c0_10] : memref<1x32xf32, #tpu.memory_space<vmem>>, vector<1x32xf32>
    %c0_11 = arith.constant 0 : index
    %c0_12 = arith.constant 0 : index
    %13 = vector.load %arg6[%c0_11, %c0_12] : memref<1x32xf32, #tpu.memory_space<vmem>>, vector<1x32xf32>
    %cst_13 = arith.constant dense<0.000000e+00> : vector<5xf32>
    %14 = vector.multi_reduction <add>, %11, %cst_13 [1] : vector<5x32xf32> to vector<5xf32>
    %15 = vector.shape_cast %14 : vector<5xf32> to vector<5x1xf32>
    %cst_14 = arith.constant 3.200000e+01 : f32
    %16 = vector.broadcast %cst_14 : f32 to vector<5x1xf32>
    %17 = arith.divf %15, %16 : vector<5x1xf32>
    %18 = vector.broadcast %17 : vector<5x1xf32> to vector<5x32xf32>
    %19 = arith.subf %11, %18 : vector<5x32xf32>
    %20 = arith.mulf %19, %19 : vector<5x32xf32>
    %cst_15 = arith.constant dense<0.000000e+00> : vector<5xf32>
    %21 = vector.multi_reduction <add>, %20, %cst_15 [1] : vector<5x32xf32> to vector<5xf32>
    %22 = vector.shape_cast %21 : vector<5xf32> to vector<5x1xf32>
    %cst_16 = arith.constant 3.200000e+01 : f32
    %23 = vector.broadcast %cst_16 : f32 to vector<5x1xf32>
    %24 = arith.divf %22, %23 : vector<5x1xf32>
    %cst_17 = arith.constant 9.99999974E-6 : f32
    %25 = vector.broadcast %cst_17 : f32 to vector<5x1xf32>
    %26 = arith.addf %24, %25 : vector<5x1xf32>
    %27 = math.rsqrt %26 : vector<5x1xf32>
    %28 = vector.broadcast %27 : vector<5x1xf32> to vector<5x32xf32>
    %29 = arith.mulf %19, %28 : vector<5x32xf32>
    %30 = vector.broadcast %12 : vector<1x32xf32> to vector<5x32xf32>
    %31 = arith.mulf %29, %30 : vector<5x32xf32>
    %32 = vector.broadcast %13 : vector<1x32xf32> to vector<5x32xf32>
    %33 = arith.addf %31, %32 : vector<5x32xf32>
    %34 = arith.truncf %33 : vector<5x32xf32> to vector<5x32xbf16>
    %c0_18 = arith.constant 0 : index
    %c0_19 = arith.constant 0 : index
    %c0_20 = arith.constant 0 : index
    %35 = vector.load %arg7[%c0_18, %c0_19, %c0_20] : memref<1x5x32xbf16, #tpu.memory_space<vmem>>, vector<1x5x32xbf16>
    %36 = vector.shape_cast %35 : vector<1x5x32xbf16> to vector<5x32xbf16>
    %37 = vector.shape_cast %34 : vector<5x32xbf16> to vector<1x5x32xbf16>
    tpu.vector_store %arg7[%c0_18, %c0_19, %c0_20], %37 {strides = array<i32>} : memref<1x5x32xbf16, #tpu.memory_space<vmem>>, vector<1x5x32xbf16>,
    return
  }
  func.func @transform_0(%arg0: i32) -> (i32, i32, i32) {
    %c0_i32 = arith.constant 0 : i32
    %c0_i32_0 = arith.constant 0 : i32
    %c0_i32_1 = arith.constant 0 : i32
    return %arg0, %c0_i32, %c0_i32_0 : i32, i32, i32
  }
  func.func @transform_1(%arg0: i32) -> (i32, i32) {
    %c0_i32 = arith.constant 0 : i32
    %c0_i32_0 = arith.constant 0 : i32
    %c0_i32_1 = arith.constant 0 : i32
    return %c0_i32, %c0_i32_0 : i32, i32
  }
  func.func @transform_2(%arg0: i32) -> (i32, i32) {
    %c0_i32 = arith.constant 0 : i32
    %c0_i32_0 = arith.constant 0 : i32
    %c0_i32_1 = arith.constant 0 : i32
    return %c0_i32, %c0_i32_0 : i32, i32
  }
  func.func @transform_3(%arg0: i32) -> (i32, i32) {
    %c0_i32 = arith.constant 0 : i32
    %c0_i32_0 = arith.constant 0 : i32
    %c0_i32_1 = arith.constant 0 : i32
    return %c0_i32, %c0_i32_0 : i32, i32
  }
  func.func @transform_4(%arg0: i32) -> (i32, i32) {
    %c0_i32 = arith.constant 0 : i32
    %c0_i32_0 = arith.constant 0 : i32
    %c0_i32_1 = arith.constant 0 : i32
    return %c0_i32, %c0_i32_0 : i32, i32
  }
  func.func @transform_5(%arg0: i32) -> (i32, i32) {
    %c0_i32 = arith.constant 0 : i32
    %c0_i32_0 = arith.constant 0 : i32
    %c0_i32_1 = arith.constant 0 : i32
    return %c0_i32, %c0_i32_0 : i32, i32
  }
  func.func @transform_6(%arg0: i32) -> (i32, i32, i32) {
    %c0_i32 = arith.constant 0 : i32
    %c0_i32_0 = arith.constant 0 : i32
    %c0_i32_1 = arith.constant 0 : i32
    return %arg0, %c0_i32, %c0_i32_0 : i32, i32, i32
  }
}

</mosaic_0001>

<llo_original>
// kernel: tpu_custom_call.1
$region0: #{tpu_custom_call.1}
  #allocation0 [shape = 'u32[]', space=smem, size = 0x4, offset = 0x4, fixed_abs, tag = 'smem constant byte address 0x4 - core index']
  #allocation1 [shape = 'u32[72,128]{1,0:T(1,128)}', space=vmem, size = 0x9000, scoped, tag = 'internal scratch']
  %s0 = inlined_call_operand.vmem [shape: f32[2,4,192], index: 0, kind: input, shape index: {}]
  %s1 = inlined_call_operand.vmem [shape: bf16[192,32], index: 1, kind: input, shape index: {}]
  %s2 = inlined_call_operand.vmem [shape: f32[1,32], index: 2, kind: input, shape index: {}]
  %s3 = inlined_call_operand.vmem [shape: f32[5,32], index: 3, kind: input, shape index: {}]
  %s4 = inlined_call_operand.vmem [shape: f32[1,32], index: 4, kind: input, shape index: {}]
  %s5 = inlined_call_operand.vmem [shape: f32[1,32], index: 5, kind: input, shape index: {}]
  %s6 = inlined_call_operand.vmem [shape: bf16[2,5,32], index: 6, kind: output, shape index: {}]
  %s7 = sld [smem:[#allocation0]]
  $region57: #{tpu_custom_call.1} parent=0
    _
  %s9 = ssub.s32 1, %s7
  %s10 = scalar_select 0, %s9, %s7
  loop: start=0, step=1, limit=4
  $region2: #{tpu_custom_call.1} parent=0 // loop_pre_header
    _
  $region3: #{tpu_custom_call.1} parent=0 // loop_header
    %s12 = sphi 0, %s16
    %p13 = scmp.ge.s32.totalorder %s12, 4
    %s22 = sphi 0, %s24
    %s25 = sphi 0, %s22
    %s26 = sphi 0, %s25
    %s42 = sphi 0, %s26
    %s46 = sphi 0, %s46
    %s48 = sphi 0, %s46
    %s49 = sphi 0, %s48
    %s63 = sphi 0, %s49
    %s67 = sphi 0, %s67
    %s69 = sphi 0, %s67
    %s70 = sphi 0, %s69
    %s84 = sphi 0, %s70
    %s88 = sphi 0, %s88
    %s90 = sphi 0, %s88
    %s91 = sphi 0, %s90
    %s105 = sphi 0, %s91
    %s109 = sphi 0, %s109
    %s111 = sphi 0, %s109
    %s112 = sphi 0, %s111
    %s126 = sphi 0, %s112
    %s130 = sphi 0, %s130
    %s132 = sphi 0, %s130
    %s133 = sphi 0, %s132
    %s147 = sphi 0, %s133
    %s153 = sphi 0, %s155
    %s156 = sphi 0, %s153
    %s157 = sphi 0, %s156
    %s173 = sphi 0, %s157
  $region4: #{tpu_custom_call.1} parent=0 // loop_header_branch
    %15 = sbr.rel (%p13) target = $region8
  $region5: #{tpu_custom_call.1} parent=0 // loop_body
    %s17 = ssub.s32 %s12, 1
    %s18 = ssub.s32 %s12, 2
    %s19 = sadd.s32 %s12, 1
    %s20 = ssub.s32 %s12, %s19
    %p21 = scmp.eq.s32.totalorder %s20, 0
    %s23 = sadd.s32 %s22, 1
    %s24 = scalar_select %p21, %s22, %s23
    %p27 = pneg %p21
    %p28 = scmp.eq.s32.totalorder %s12, 1
    %p29 = por %p27, %p28
    %p30 = scmp.ne.s32.totalorder %s22, %s25
    %p31 = scmp.eq.s32.totalorder %s12, 0
    %p32 = por %p30, %p31
    %p33 = scmp.ne.s32.totalorder %s22, %s25
    %p34 = scmp.eq.s32.totalorder %s17, 1
    %p35 = por %p33, %p34
    %p36 = scmp.ne.s32.totalorder %s25, %s26
    %p37 = scmp.eq.s32.totalorder %s17, 0
    %p38 = por %p36, %p37
    %p39 = scmp.ne.s32.totalorder %s25, %s26
    %p40 = scmp.eq.s32.totalorder %s18, 1
    %p41 = por %p39, %p40
    %p43 = scmp.ne.s32.totalorder %s26, %s42
    %p44 = scmp.eq.s32.totalorder %s18, 0
    %p45 = por %p43, %p44
    %s47 = sadd.s32 %s46, 1
    %p50 = scmp.eq.s32.totalorder %s12, 1
    %p51 = scmp.ne.s32.totalorder %s46, %s48
    %p52 = scmp.eq.s32.totalorder %s12, 0
    %p53 = por %p51, %p52
    %p54 = scmp.ne.s32.totalorder %s46, %s48
    %p55 = scmp.eq.s32.totalorder %s17, 1
    %p56 = por %p54, %p55
    %p57 = scmp.ne.s32.totalorder %s48, %s49
    %p58 = scmp.eq.s32.totalorder %s17, 0
    %p59 = por %p57, %p58
    %p60 = scmp.ne.s32.totalorder %s48, %s49
    %p61 = scmp.eq.s32.totalorder %s18, 1
    %p62 = por %p60, %p61
    %p64 = scmp.ne.s32.totalorder %s49, %s63
    %p65 = scmp.eq.s32.totalorder %s18, 0
    %p66 = por %p64, %p65
    %s68 = sadd.s32 %s67, 1
    %p71 = scmp.eq.s32.totalorder %s12, 1
    %p72 = scmp.ne.s32.totalorder %s67, %s69
    %p73 = scmp.eq.s32.totalorder %s12, 0
    %p74 = por %p72, %p73
    %p75 = scmp.ne.s32.totalorder %s67, %s69
    %p76 = scmp.eq.s32.totalorder %s17, 1
    %p77 = por %p75, %p76
    %p78 = scmp.ne.s32.totalorder %s69, %s70
    %p79 = scmp.eq.s32.totalorder %s17, 0
    %p80 = por %p78, %p79
    %p81 = scmp.ne.s32.totalorder %s69, %s70
    %p82 = scmp.eq.s32.totalorder %s18, 1
    %p83 = por %p81, %p82
    %p85 = scmp.ne.s32.totalorder %s70, %s84
    %p86 = scmp.eq.s32.totalorder %s18, 0
    %p87 = por %p85, %p86
    %s89 = sadd.s32 %s88, 1
    %p92 = scmp.eq.s32.totalorder %s12, 1
    %p93 = scmp.ne.s32.totalorder %s88, %s90
    %p94 = scmp.eq.s32.totalorder %s12, 0
    %p95 = por %p93, %p94
    %p96 = scmp.ne.s32.totalorder %s88, %s90
    %p97 = scmp.eq.s32.totalorder %s17, 1
    %p98 = por %p96, %p97
    %p99 = scmp.ne.s32.totalorder %s90, %s91
    %p100 = scmp.eq.s32.totalorder %s17, 0
    %p101 = por %p99, %p100
    %p102 = scmp.ne.s32.totalorder %s90, %s91
    %p103 = scmp.eq.s32.totalorder %s18, 1
    %p104 = por %p102, %p103
    %p106 = scmp.ne.s32.totalorder %s91, %s105
    %p107 = scmp.eq.s32.totalorder %s18, 0
    %p108 = por %p106, %p107
    %s110 = sadd.s32 %s109, 1
    %p113 = scmp.eq.s32.totalorder %s12, 1
    %p114 = scmp.ne.s32.totalorder %s109, %s111
    %p115 = scmp.eq.s32.totalorder %s12, 0
    %p116 = por %p114, %p115
    %p117 = scmp.ne.s32.totalorder %s109, %s111
    %p118 = scmp.eq.s32.totalorder %s17, 1
    %p119 = por %p117, %p118
    %p120 = scmp.ne.s32.totalorder %s111, %s112
    %p121 = scmp.eq.s32.totalorder %s17, 0
    %p122 = por %p120, %p121
    %p123 = scmp.ne.s32.totalorder %s111, %s112
    %p124 = scmp.eq.s32.totalorder %s18, 1
    %p125 = por %p123, %p124
    %p127 = scmp.ne.s32.totalorder %s112, %s126
    %p128 = scmp.eq.s32.totalorder %s18, 0
    %p129 = por %p127, %p128
    %s131 = sadd.s32 %s130, 1
    %p134 = scmp.eq.s32.totalorder %s12, 1
    %p135 = scmp.ne.s32.totalorder %s130, %s132
    %p136 = scmp.eq.s32.totalorder %s12, 0
    %p137 = por %p135, %p136
    %p138 = scmp.ne.s32.totalorder %s130, %s132
    %p139 = scmp.eq.s32.totalorder %s17, 1
    %p140 = por %p138, %p139
    %p141 = scmp.ne.s32.totalorder %s132, %s133
    %p142 = scmp.eq.s32.totalorder %s17, 0
    %p143 = por %p141, %p142
    %p144 = scmp.ne.s32.totalorder %s132, %s133
    %p145 = scmp.eq.s32.totalorder %s18, 1
    %p146 = por %p144, %p145
    %p148 = scmp.ne.s32.totalorder %s133, %s147
    %p149 = scmp.eq.s32.totalorder %s18, 0
    %p150 = por %p148, %p149
    %s151 = ssub.s32 %s12, %s19
    %p152 = scmp.eq.s32.totalorder %s151, 0
    %s154 = sadd.s32 %s153, 1
    %s155 = scalar_select %p152, %s153, %s154
    %p158 = pneg %p152
    %p159 = scmp.eq.s32.totalorder %s12, 1
    %p160 = por %p158, %p159
    %p161 = scmp.ne.s32.totalorder %s153, %s156
    %p162 = scmp.eq.s32.totalorder %s12, 0
    %p163 = por %p161, %p162
    %p164 = scmp.ne.s32.totalorder %s153, %s156
    %p165 = scmp.eq.s32.totalorder %s17, 1
    %p166 = por %p164, %p165
    %p167 = scmp.ne.s32.totalorder %s156, %s157
    %p168 = scmp.eq.s32.totalorder %s17, 0
    %p169 = por %p167, %p168
    %p170 = scmp.ne.s32.totalorder %s156, %s157
    %p171 = scmp.eq.s32.totalorder %s18, 1
    %p172 = por %p170, %p171
    %p174 = scmp.ne.s32.totalorder %s157, %s173
    %p175 = scmp.eq.s32.totalorder %s18, 0
    %p176 = por %p174, %p175
    %p177 = scmp.le.s32.totalorder 1, %s12
    %p178 = scmp.lt.s32.totalorder %s12, 3
    %p179 = pnand %p177, %p178
    %p180 = pneg %p179
    // Predicated region
    $region9: #{tpu_custom_call.1} parent=5 // pred_check
      _
    $region10: #{tpu_custom_call.1} parent=5 // pred_check_branch
      %182 = sbr.rel (%p179) target = $region12
    $region11: #{tpu_custom_call.1} parent=5 // pred_region
      %s183 = ssub.s32 %s12, 1
      // Predicated region
      $region13: #{tpu_custom_call.1} parent=11 // pred_check
        %p184 = pneg %p59
      $region14: #{tpu_custom_call.1} parent=11 // pred_check_branch
        %186 = sbr.rel (%p184) target = $region16
      $region15: #{tpu_custom_call.1} parent=11 // pred_region
        _
      $region16: #{tpu_custom_call.1} parent=11 // pred_fallthru
        _
      // Predicated region
      $region17: #{tpu_custom_call.1} parent=11 // pred_check
        %p187 = pneg %p80
      $region18: #{tpu_custom_call.1} parent=11 // pred_check_branch
        %189 = sbr.rel (%p187) target = $region20
      $region19: #{tpu_custom_call.1} parent=11 // pred_region
        _
      $region20: #{tpu_custom_call.1} parent=11 // pred_fallthru
        _
      // Predicated region
      $region21: #{tpu_custom_call.1} parent=11 // pred_check
        %p190 = pneg %p101
      $region22: #{tpu_custom_call.1} parent=11 // pred_check_branch
        %192 = sbr.rel (%p190) target = $region24
      $region23: #{tpu_custom_call.1} parent=11 // pred_region
        _
      $region24: #{tpu_custom_call.1} parent=11 // pred_fallthru
        _
      // Predicated region
      $region25: #{tpu_custom_call.1} parent=11 // pred_check
        %p193 = pneg %p122
      $region26: #{tpu_custom_call.1} parent=11 // pred_check_branch
        %195 = sbr.rel (%p193) target = $region28
      $region27: #{tpu_custom_call.1} parent=11 // pred_region
        _
      $region28: #{tpu_custom_call.1} parent=11 // pred_fallthru
        _
      // Predicated region
      $region29: #{tpu_custom_call.1} parent=11 // pred_check
        %p196 = pneg %p143
      $region30: #{tpu_custom_call.1} parent=11 // pred_check_branch
        %198 = sbr.rel (%p196) target = $region32
      $region31: #{tpu_custom_call.1} parent=11 // pred_region
        _
      $region32: #{tpu_custom_call.1} parent=11 // pred_fallthru
        _
    $region12: #{tpu_custom_call.1} parent=5 // pred_fallthru
      _
    %p199 = scmp.lt.s32.totalorder %s12, 2
    // Predicated region
    $region33: #{tpu_custom_call.1} parent=5 // pred_check
      %p200 = pneg %p199
    $region34: #{tpu_custom_call.1} parent=5 // pred_check_branch
      %202 = sbr.rel (%p200) target = $region36
    $region35: #{tpu_custom_call.1} parent=5 // pred_region
      // Predicated region
      $region37: #{tpu_custom_call.1} parent=35 // pred_check
        %p203 = pneg %p32
      $region38: #{tpu_custom_call.1} parent=35 // pred_check_branch
        %205 = sbr.rel (%p203) target = $region40
      $region39: #{tpu_custom_call.1} parent=35 // pred_region
        %p206 = scmp.lt.s32.totalorder %s12, 1
        %s207 = scalar_select %p206, %s12, 1
        %s208 = smul.addr %s207, 2
        %s209 = smul.addr %s208, 4
        %s210 = scalar_lea.vmem %s0, %s209
      $region40: #{tpu_custom_call.1} parent=35 // pred_fallthru
        _
    $region36: #{tpu_custom_call.1} parent=5 // pred_fallthru
      _
    %p211 = scmp.le.s32.totalorder 1, %s12
    %p212 = scmp.lt.s32.totalorder %s12, 3
    %p213 = pnand %p211, %p212
    %p214 = pneg %p213
    // Predicated region
    $region41: #{tpu_custom_call.1} parent=5 // pred_check
      _
    $region42: #{tpu_custom_call.1} parent=5 // pred_check_branch
      %216 = sbr.rel (%p213) target = $region44
    $region43: #{tpu_custom_call.1} parent=5 // pred_region
      %s217 = ssub.s32 %s12, 1
      %p218 = scmp.lt.s32.totalorder %s17, 1
      %s219 = scalar_select %p218, %s17, 1
      %s220 = smul.addr %s219, 2
      %s221 = smul.addr %s220, 4
      %s222 = scalar_lea.vmem %s0, %s221
      %p223 = pneg %p38
      %p224 = pneg %p35
      %p225 = pneg %p59
      %p226 = pneg %p56
      %p227 = pneg %p80
      %p228 = pneg %p77
      %p229 = pneg %p101
      %p230 = pneg %p98
      %p231 = pneg %p122
      %p232 = pneg %p119
      %p233 = pneg %p143
      %p234 = pneg %p140
      %p235 = pneg %p169
      %p236 = pneg %p166
      %p237 = scmp.lt.s32.totalorder %s17, 1
      %s238 = scalar_select %p237, %s17, 1
      %s239 = smul.addr %s238, 4
      %s240 = scalar_lea.vmem %s6, %s239
      %p241 = scmp.lt.s32.totalorder %s17, 1
      %s242 = scalar_select %p241, %s17, 1
      %s243 = smul.addr %s242, 2
      %s244 = smul.addr %s243, 4
      %s245 = scalar_lea.vmem %s0, %s244
      %p246 = scmp.lt.s32.totalorder %s17, 1
      %s247 = scalar_select %p246, %s17, 1
      %s248 = smul.addr %s247, 4
      %s249 = scalar_lea.vmem %s6, %s248
      %v251 = vld [vmem:[%s245] sm:$0xff]
      %253 = vst [vmem:[#allocation1] ss:$2 sm:$0xff] %v251
      %v254 = vld.sshfl [vmem:[#allocation1] sm:$0xff pattern:$0x75316420]
      %v255 = vld.sshfl [vmem:[#allocation1 + $0x8] sm:$0xff pattern:$0x75316420]
      %v258 = vpack.c.bf16 %v254, %v254
      %v259 = vpack.c.bf16 %v255, %v255
      %v260 = vld [vmem:[%s1] sm:$0xf]
      %v261 = vld [vmem:[%s1 + $0x4] sm:$0xf]
      %v262 = vld [vmem:[%s1 + $0x8] sm:$0xf]
      %v263 = vld [vmem:[%s1 + $0xc] sm:$0xf]
      %v264 = vld [vmem:[%s1 + $0x10] sm:$0xf]
      %v265 = vld [vmem:[%s1 + $0x14] sm:$0xf]
      %v266 = vld [vmem:[%s1 + $0x18] sm:$0xf]
      %v267 = vld [vmem:[%s1 + $0x1c] sm:$0xf]
      %v268 = vld [vmem:[%s1 + $0x20] sm:$0xf]
      %v269 = vld [vmem:[%s1 + $0x24] sm:$0xf]
      %v270 = vld [vmem:[%s1 + $0x28] sm:$0xf]
      %v271 = vld [vmem:[%s1 + $0x2c] sm:$0xf]
      %v272 = vld [vmem:[%s1 + $0x30] sm:$0xf]
      %v273 = vld [vmem:[%s1 + $0x34] sm:$0xf]
      %v274 = vld [vmem:[%s1 + $0x38] sm:$0xf]
      %v275 = vld [vmem:[%s1 + $0x3c] sm:$0xf]
      %v276 = vld [vmem:[%s1 + $0x40] sm:$0xf]
      %v277 = vld [vmem:[%s1 + $0x44] sm:$0xf]
      %v278 = vld [vmem:[%s1 + $0x48] sm:$0xf]
      %v279 = vld [vmem:[%s1 + $0x4c] sm:$0xf]
      %v280 = vld [vmem:[%s1 + $0x50] sm:$0xf]
      %v281 = vld [vmem:[%s1 + $0x54] sm:$0xf]
      %v282 = vld [vmem:[%s1 + $0x58] sm:$0xf]
      %v283 = vld [vmem:[%s1 + $0x5c] sm:$0xf]
      %v284 = vld [vmem:[%s2] sm:$0x1]
      %v286 = vperm.slane %v284, 0
      %v312 = vunpack.c.l.b16 %v260
      %v313 = vunpack.c.l.b16 %v261
      %v314 = vunpack.c.l.b16 %v262
      %v315 = vunpack.c.l.b16 %v263
      %v316 = vunpack.c.l.b16 %v264
      %v317 = vunpack.c.l.b16 %v265
      %v318 = vunpack.c.l.b16 %v266
      %v319 = vunpack.c.l.b16 %v267
      %v320 = vunpack.c.l.b16 %v268
      %v321 = vunpack.c.l.b16 %v269
      %v322 = vunpack.c.l.b16 %v270
      %v323 = vunpack.c.l.b16 %v271
      %v324 = vunpack.c.l.b16 %v272
      %v325 = vunpack.c.l.b16 %v273
      %v326 = vunpack.c.l.b16 %v274
      %v327 = vunpack.c.l.b16 %v275
      %v328 = vunpack.c.l.b16 %v276
      %v329 = vunpack.c.l.b16 %v277
      %v330 = vunpack.c.l.b16 %v278
      %v331 = vunpack.c.l.b16 %v279
      %v332 = vunpack.c.l.b16 %v280
      %v333 = vunpack.c.l.b16 %v281
      %v334 = vunpack.c.l.b16 %v282
      %v335 = vunpack.c.l.b16 %v283
      %v336 = vpack.c.b16 %v313, %v312
      %v337 = vpack.c.b16 %v315, %v314
      %v338 = vpack.c.b16 %v317, %v316
      %v339 = vpack.c.b16 %v319, %v318
      %v340 = vpack.c.b16 %v321, %v320
      %v341 = vpack.c.b16 %v323, %v322
      %v342 = vpack.c.b16 %v325, %v324
      %v343 = vpack.c.b16 %v327, %v326
      %v344 = vpack.c.b16 %v329, %v328
      %v345 = vpack.c.b16 %v331, %v330
      %v346 = vpack.c.b16 %v333, %v332
      %v347 = vpack.c.b16 %v335, %v334
      %vm360 = vcmask 523264
      %v362 = vsel %vm360, %v259, 0
      %364 = vmatpush.bf16.msra.mxu0 %v343
      %365 = vmatpush.bf16.msra.mxu0 %v342
      %366 = vmatpush.bf16.msra.mxu0 %v341
      %367 = vmatpush.bf16.msra.mxu0 %v340
      %368 = vmatpush.bf16.msra.mxu0 %v339
      %369 = vmatpush.bf16.msra.mxu0 %v338
      %370 = vmatpush.bf16.msra.mxu0 %v337
      %371 = vmatpush.bf16.msra.mxu0 %v336
      %372 = vmatmul.bf16.gmra.mxu0 %v258
      %v373 = vpop.f32.mrf.mxu0
      %v374 = vadd.f32 %v286, %v373
      %v375 = vpop.f32.mrf.mxu0
      %376 = vdwg.mxu0
      %377 = vmatpush.bf16.msra.mxu0 0
      %378 = vmatpush.bf16.msra.mxu0 0
      %379 = vmatpush.bf16.msra.mxu0 0
      %380 = vmatpush.bf16.msra.mxu0 0
      %381 = vmatpush.bf16.msra.mxu0 %v347
      %382 = vmatpush.bf16.msra.mxu0 %v346
      %383 = vmatpush.bf16.msra.mxu0 %v345
      %384 = vmatpush.bf16.msra.mxu0 %v344
      %385 = vmatmul.bf16.gmra.mxu0 %v362
      %v386 = vpop.f32.mrf.mxu0
      %v387 = vadd.f32 %v374, %v386
      %v388 = vpop.f32.mrf.mxu0
      %389 = vdwg.mxu0
      %v391 = vrot.slane %v387, 7
      %vm393 = vcmask 1040384
      %v394 = vsel %vm393, 0.0, %v391
      %v395 = vld [vmem:[%s3] sm:$0x1f]
      %v396 = vadd.f32 %v394, %v395
      %v397 = vld [vmem:[%s4] sm:$0x1]
      %v398 = vld [vmem:[%s5] sm:$0x1]
      %vm399 = vcmask 258048
      %v400 = vsel %vm399, %v396, 0.0
      %401 = vadd.xlane.f32.xlu0 %v400
      %v402 = vpop.xlane.xlu0 %401
      %v403 = vrcp.pop 32.0
      %v404 = vmul.f32 32.0, %v403
      %v405 = vsub.f32 1.0, %v404
      %v406 = vmul.f32 %v403, %v405
      %v407 = vadd.f32 %v403, %v406
      %vm408 = vweird.f32 %v403
      %v409 = vsel %vm408, %v403, %v407
      %v410 = vmul.f32 %v402, %v409
      %v411 = vsub.f32 %v396, %v410
      %v412 = vmul.f32 %v411, %v411
      %v413 = vsel %vm399, %v412, 0.0
      %414 = vadd.xlane.f32.xlu0 %v413
      %v415 = vpop.xlane.xlu0 %414
      %v416 = vmul.f32 %v415, %v409
      %v417 = vadd.f32 %v416, 1e-05
      %v418 = vrsqrt.pop %v417
      %v419 = vmul.f32 %v418, %v417
      %v420 = vmul.f32 %v419, %v418
      %v421 = vmul.f32 0.5, %v420
      %v422 = vsub.f32 1.5, %v421
      %v423 = vmul.f32 %v418, %v422
      %vm424 = vweird.f32 %v417
      %vm425 = vweird.f32 %v418
      %vm426 = vmor %vm424, %vm425
      %v427 = vsel %vm426, %v418, %v423
      %v428 = vmul.f32 %v411, %v427
      %v430 = vperm.slane %v397, 0
      %v432 = vmul.f32 %v428, %v430
      %v434 = vperm.slane %v398, 0
      %v436 = vadd.f32 %v432, %v434
      %v437 = vpack.c.bf16 %v436, %v436
      %vm438 = vcmask 256000
      %vm439 = vsmask.f32 2304
      %vm440 = vmand %vm438, %vm439
      %v441 = vld [vmem:[%s249] sm:$0x7]
      %v442 = vsel %vm440, %v437, %v441
      %443 = vst [vmem:[%s249] sm:$0x7] %v442
      %p444 = scmp.lt.s32.totalorder %s17, 1
      %s445 = scalar_select %p444, %s17, 1
      %s446 = smul.addr %s445, 4
      %s447 = scalar_lea.vmem %s6, %s446
      // Predicated region
      $region45: #{tpu_custom_call.1} parent=43 // pred_check
        %p448 = pneg %p166
      $region46: #{tpu_custom_call.1} parent=43 // pred_check_branch
        %450 = sbr.rel (%p448) target = $region48
      $region47: #{tpu_custom_call.1} parent=43 // pred_region
        _
      $region48: #{tpu_custom_call.1} parent=43 // pred_fallthru
        _
    $region44: #{tpu_custom_call.1} parent=5 // pred_fallthru
      _
    %p451 = scmp.le.s32.totalorder 2, %s12
    // Predicated region
    $region49: #{tpu_custom_call.1} parent=5 // pred_check
      %p452 = pneg %p451
    $region50: #{tpu_custom_call.1} parent=5 // pred_check_branch
      %454 = sbr.rel (%p452) target = $region52
    $region51: #{tpu_custom_call.1} parent=5 // pred_region
      %s455 = ssub.s32 %s12, 2
      // Predicated region
      $region53: #{tpu_custom_call.1} parent=51 // pred_check
        %p456 = pneg %p172
      $region54: #{tpu_custom_call.1} parent=51 // pred_check_branch
        %458 = sbr.rel (%p456) target = $region56
      $region55: #{tpu_custom_call.1} parent=51 // pred_region
        %p459 = scmp.lt.s32.totalorder %s18, 1
        %s460 = scalar_select %p459, %s18, 1
        %s461 = smul.addr %s460, 4
        %s462 = scalar_lea.vmem %s6, %s461
      $region56: #{tpu_custom_call.1} parent=51 // pred_fallthru
        _
    $region52: #{tpu_custom_call.1} parent=5 // pred_fallthru
      _
  $region6: #{tpu_custom_call.1} parent=0 // loop_footer
    %s16 = sadd.s32 1, %s12
  $region7: #{tpu_custom_call.1} parent=0 // loop_footer_branch
    %11 = sbr.rel target = $region3
  $region8: #{tpu_custom_call.1} parent=0 // loop_exit
    _

</llo_original>
